<compile_context>
chip_gen: v7x
topology: tpu7x:2x2x1
jax: 0.10.0
libtpu: 0.0.40
codegen_flags: <defaults>
</compile_context>

<pallas_src>
import math

import jax
import jax.numpy as jnp
from jax.experimental import pallas as pl
from jax.experimental.pallas import tpu as pltpu

NDF = 64
NEG_SLOPE = 0.2  # nn.LeakyReLU(0.2) in the module


def _lrelu(y):
    return jnp.where(y >= 0, y, NEG_SLOPE * y)


# --------------------------------------------------------------------------
# Fused kernel: 4 chained 1x1 convs (matmuls) + bias + LeakyReLU(0.2)
# --------------------------------------------------------------------------
def _pixel_disc_kernel(x_ref, w1_ref, b1_ref, w2_ref, w3_ref, w4_ref, o_ref):
    # x_ref : (Cin, tm)        activations, pixels along lanes
    # w1_ref: (ndf, Cin)       b1_ref: (ndf, 1)
    # w2_ref: (2*ndf, ndf)     w3_ref: (2*ndf, 2*ndf)     w4_ref: (1, 2*ndf)
    # o_ref : (1, tm)          lane-dense single-channel output
    x = x_ref[...]
    y = jnp.dot(w1_ref[...], x, preferred_element_type=jnp.float32) + b1_ref[...]
    y = _lrelu(y)
    y = _lrelu(jnp.dot(w2_ref[...], y, preferred_element_type=jnp.float32))
    y = _lrelu(jnp.dot(w3_ref[...], y, preferred_element_type=jnp.float32))
    y = jnp.dot(w4_ref[...], y, preferred_element_type=jnp.float32)
    o_ref[...] = y.astype(o_ref.dtype)


def _pick_tile(M, cap=4096):
    """Largest multiple of 128 dividing M (capped), preferring >=2 grid blocks."""
    assert M % 128 == 0, "N*H*W must be a multiple of 128"
    target = min(cap, max(128, M // 2))  # >=2 blocks when possible (v7x megacore)
    tm, t = 128, 128
    while t <= min(M, target):
        if M % t == 0:
            tm = t
        t += 128
    return tm


def pixel_discriminator_forward(params, x_nchw):
    N, C, H, W = x_nchw.shape
    M = N * H * W
    tm = _pick_tile(M)

    # (N,C,H,W) -> (C, N*H*W): channels on sublanes, pixels on lanes.
    x_t = jnp.transpose(x_nchw, (1, 0, 2, 3)).reshape(C, M)

    w1, b1 = params["w1"], params["b1"]
    w2, w3, w4 = params["w2"], params["w3"], params["w4"]
    ndf = w1.shape[0]
    ndf2 = w2.shape[0]

    out = pl.pallas_call(
        _pixel_disc_kernel,
        out_shape=jax.ShapeDtypeStruct((1, M), x_nchw.dtype),
        grid_spec=pltpu.PrefetchScalarGridSpec(
            num_scalar_prefetch=0,
            grid=(M // tm,),
            in_specs=[
                pl.BlockSpec((C, tm), lambda m: (0, m)),
                pl.BlockSpec((ndf, C), lambda m: (0, 0)),
                pl.BlockSpec((ndf, 1), lambda m: (0, 0)),
                pl.BlockSpec((ndf2, ndf), lambda m: (0, 0)),
                pl.BlockSpec((ndf2, ndf2), lambda m: (0, 0)),
                pl.BlockSpec((1, ndf2), lambda m: (0, 0)),
            ],
            out_specs=pl.BlockSpec((1, tm), lambda m: (0, m)),
        ),
        compiler_params=pltpu.CompilerParams(
            dimension_semantics=("parallel",)),
    )(x_t, w1, b1.reshape(ndf, 1), w2, w3, w4)

    # (1, N*H*W) -> (N, 1, H, W)
    return jnp.transpose(out.reshape(1, N, H, W), (1, 0, 2, 3))


# --------------------------------------------------------------------------
# Parameter init (deterministic; shapes from the nn.Module __init__)
# --------------------------------------------------------------------------
def init_params(key, input_nc, ndf=NDF):
    k1, k1b, k2, k3, k4 = jax.random.split(key, 5)

    def u(k, shape, fan_in):
        s = 1.0 / math.sqrt(fan_in)
        return jax.random.uniform(k, shape, jnp.float32, -s, s)

    return {
        # PyTorch conv weights (Cout, Cin, 1, 1) stored squeezed as (Cout, Cin).
        "w1": u(k1, (ndf, input_nc), input_nc),
        "b1": u(k1b, (ndf,), input_nc),
        "w2": u(k2, (2 * ndf, ndf), ndf),          # bias=False (BatchNorm2d default)
        "w3": u(k3, (2 * ndf, 2 * ndf), 2 * ndf),  # bias=False
        "w4": u(k4, (1, 2 * ndf), 2 * ndf),        # bias=False
    }


# --------------------------------------------------------------------------
# Pure-JAX reference matching PixelDiscriminatorPj.forward
# --------------------------------------------------------------------------
def reference_forward(params, x):
    y = jnp.einsum("oc,nchw->nohw", params["w1"], x) \
        + params["b1"].reshape(1, -1, 1, 1)
    y = _lrelu(y)
    y = _lrelu(jnp.einsum("oc,nchw->nohw", params["w2"], y))
    y = _lrelu(jnp.einsum("oc,nchw->nohw", params["w3"], y))
    return jnp.einsum("oc,nchw->nohw", params["w4"], y)


if __name__ == "__main__":
    key = jax.random.PRNGKey(0)
    kx, kp = jax.random.split(key)

    N, C, H, W = 2, 4, 16, 16          # N*H*W = 512 (multiple of 128)
    x = jax.random.normal(kx, (N, C, H, W), jnp.float32)
    params = init_params(kp, C)

    out = jax.block_until_ready(pixel_discriminator_forward(params, x))
    assert out.shape == (N, 1, H, W), out.shape

    ref = reference_forward(params, x)
    err = float(jnp.max(jnp.abs(out - ref)))
    assert jnp.allclose(out, ref, atol=1e-3, rtol=1e-3), err
    print("KERNEL_OK")
</pallas_src>

<mosaic_0001>
module attributes {stable_mosaic.version = 11 : i64} {
  func.func @_pixel_disc_kernel(%arg0: i32, %arg1: memref<4x256xf32, #tpu.memory_space<vmem>>, %arg2: memref<64x4xf32, #tpu.memory_space<vmem>>, %arg3: memref<64x1xf32, #tpu.memory_space<vmem>>, %arg4: memref<128x64xf32, #tpu.memory_space<vmem>>, %arg5: memref<128x128xf32, #tpu.memory_space<vmem>>, %arg6: memref<1x128xf32, #tpu.memory_space<vmem>>, %arg7: memref<1x256xf32, #tpu.memory_space<vmem>>) attributes {dimension_semantics = [#tpu.dimension_semantics<parallel>], iteration_bounds = array<i64: 2>, scalar_prefetch = 0 : i64, scratch_operands = 0 : i64, tpu.core_type = #tpu.core_type<tc>, window_params = [{transform_indices = @transform_0, window_bounds = array<i64: 4, 256>}, {pipeline_mode = #tpu.pipeline_mode<synchronous>, transform_indices = @transform_1, window_bounds = array<i64: 64, 4>}, {pipeline_mode = #tpu.pipeline_mode<synchronous>, transform_indices = @transform_2, window_bounds = array<i64: 64, 1>}, {pipeline_mode = #tpu.pipeline_mode<synchronous>, transform_indices = @transform_3, window_bounds = array<i64: 128, 64>}, {pipeline_mode = #tpu.pipeline_mode<synchronous>, transform_indices = @transform_4, window_bounds = array<i64: 128, 128>}, {pipeline_mode = #tpu.pipeline_mode<synchronous>, transform_indices = @transform_5, window_bounds = array<i64: 1, 128>}, {transform_indices = @transform_6, window_bounds = array<i64: 1, 256>}]} {
    %c0 = arith.constant 0 : index
    %c0_0 = arith.constant 0 : index
    %0 = vector.load %arg1[%c0, %c0_0] : memref<4x256xf32, #tpu.memory_space<vmem>>, vector<4x256xf32>
    %c0_1 = arith.constant 0 : index
    %c0_2 = arith.constant 0 : index
    %1 = vector.load %arg2[%c0_1, %c0_2] : memref<64x4xf32, #tpu.memory_space<vmem>>, vector<64x4xf32>
    %cst = arith.constant dense<0.000000e+00> : vector<64x256xf32>
    %2 = tpu.matmul %1, %0, %cst {dimension_numbers = #tpu.dot_dimension_numbers<[1], [0], [0], [1], [0, 0, 1, 1], [], []>} : vector<64x4xf32>, vector<4x256xf32>, vector<64x256xf32> -> vector<64x256xf32>
    %c0_3 = arith.constant 0 : index
    %c0_4 = arith.constant 0 : index
    %3 = vector.load %arg3[%c0_3, %c0_4] : memref<64x1xf32, #tpu.memory_space<vmem>>, vector<64x1xf32>
    %4 = vector.broadcast %3 : vector<64x1xf32> to vector<64x256xf32>
    %5 = arith.addf %2, %4 : vector<64x256xf32>
    %cst_5 = arith.constant 0.000000e+00 : f32
    %6 = vector.broadcast %cst_5 : f32 to vector<64x256xf32>
    %7 = arith.cmpf oge, %5, %6 : vector<64x256xf32>
    %cst_6 = arith.constant 2.000000e-01 : f32
    %8 = vector.broadcast %cst_6 : f32 to vector<64x256xf32>
    %9 = arith.mulf %8, %5 : vector<64x256xf32>
    %10 = arith.select %7, %5, %9 : vector<64x256xi1>, vector<64x256xf32>
    %c0_7 = arith.constant 0 : index
    %c0_8 = arith.constant 0 : index
    %11 = vector.load %arg4[%c0_7, %c0_8] : memref<128x64xf32, #tpu.memory_space<vmem>>, vector<128x64xf32>
    %cst_9 = arith.constant dense<0.000000e+00> : vector<128x256xf32>
    %12 = tpu.matmul %11, %10, %cst_9 {dimension_numbers = #tpu.dot_dimension_numbers<[1], [0], [0], [1], [0, 0, 1, 1], [], []>} : vector<128x64xf32>, vector<64x256xf32>, vector<128x256xf32> -> vector<128x256xf32>
    %cst_10 = arith.constant 0.000000e+00 : f32
    %13 = vector.broadcast %cst_10 : f32 to vector<128x256xf32>
    %14 = arith.cmpf oge, %12, %13 : vector<128x256xf32>
    %cst_11 = arith.constant 2.000000e-01 : f32
    %15 = vector.broadcast %cst_11 : f32 to vector<128x256xf32>
    %16 = arith.mulf %15, %12 : vector<128x256xf32>
    %17 = arith.select %14, %12, %16 : vector<128x256xi1>, vector<128x256xf32>
    %c0_12 = arith.constant 0 : index
    %c0_13 = arith.constant 0 : index
    %18 = vector.load %arg5[%c0_12, %c0_13] : memref<128x128xf32, #tpu.memory_space<vmem>>, vector<128x128xf32>
    %cst_14 = arith.constant dense<0.000000e+00> : vector<128x256xf32>
    %19 = tpu.matmul %18, %17, %cst_14 {dimension_numbers = #tpu.dot_dimension_numbers<[1], [0], [0], [1], [0, 0, 1, 1], [], []>} : vector<128x128xf32>, vector<128x256xf32>, vector<128x256xf32> -> vector<128x256xf32>
    %cst_15 = arith.constant 0.000000e+00 : f32
    %20 = vector.broadcast %cst_15 : f32 to vector<128x256xf32>
    %21 = arith.cmpf oge, %19, %20 : vector<128x256xf32>
    %cst_16 = arith.constant 2.000000e-01 : f32
    %22 = vector.broadcast %cst_16 : f32 to vector<128x256xf32>
    %23 = arith.mulf %22, %19 : vector<128x256xf32>
    %24 = arith.select %21, %19, %23 : vector<128x256xi1>, vector<128x256xf32>
    %c0_17 = arith.constant 0 : index
    %c0_18 = arith.constant 0 : index
    %25 = vector.load %arg6[%c0_17, %c0_18] : memref<1x128xf32, #tpu.memory_space<vmem>>, vector<1x128xf32>
    %cst_19 = arith.constant dense<0.000000e+00> : vector<1x256xf32>
    %26 = tpu.matmul %25, %24, %cst_19 {dimension_numbers = #tpu.dot_dimension_numbers<[1], [0], [0], [1], [0, 0, 1, 1], [], []>} : vector<1x128xf32>, vector<128x256xf32>, vector<1x256xf32> -> vector<1x256xf32>
    %c0_20 = arith.constant 0 : index
    %c0_21 = arith.constant 0 : index
    %27 = vector.load %arg7[%c0_20, %c0_21] : memref<1x256xf32, #tpu.memory_space<vmem>>, vector<1x256xf32>
    tpu.vector_store %arg7[%c0_20, %c0_21], %26 {strides = array<i32>} : memref<1x256xf32, #tpu.memory_space<vmem>>, vector<1x256xf32>,
    return
  }
  func.func @transform_0(%arg0: i32) -> (i32, i32) {
    %c0_i32 = arith.constant 0 : i32
    %c0_i32_0 = arith.constant 0 : i32
    return %c0_i32, %arg0 : i32, i32
  }
  func.func @transform_1(%arg0: i32) -> (i32, i32) {
    %c0_i32 = arith.constant 0 : i32
    %c0_i32_0 = arith.constant 0 : i32
    %c0_i32_1 = arith.constant 0 : i32
    return %c0_i32, %c0_i32_0 : i32, i32
  }
  func.func @transform_2(%arg0: i32) -> (i32, i32) {
    %c0_i32 = arith.constant 0 : i32
    %c0_i32_0 = arith.constant 0 : i32
    %c0_i32_1 = arith.constant 0 : i32
    return %c0_i32, %c0_i32_0 : i32, i32
  }
  func.func @transform_3(%arg0: i32) -> (i32, i32) {
    %c0_i32 = arith.constant 0 : i32
    %c0_i32_0 = arith.constant 0 : i32
    %c0_i32_1 = arith.constant 0 : i32
    return %c0_i32, %c0_i32_0 : i32, i32
  }
  func.func @transform_4(%arg0: i32) -> (i32, i32) {
    %c0_i32 = arith.constant 0 : i32
    %c0_i32_0 = arith.constant 0 : i32
    %c0_i32_1 = arith.constant 0 : i32
    return %c0_i32, %c0_i32_0 : i32, i32
  }
  func.func @transform_5(%arg0: i32) -> (i32, i32) {
    %c0_i32 = arith.constant 0 : i32
    %c0_i32_0 = arith.constant 0 : i32
    %c0_i32_1 = arith.constant 0 : i32
    return %c0_i32, %c0_i32_0 : i32, i32
  }
  func.func @transform_6(%arg0: i32) -> (i32, i32) {
    %c0_i32 = arith.constant 0 : i32
    %c0_i32_0 = arith.constant 0 : i32
    return %c0_i32, %arg0 : i32, i32
  }
}

</mosaic_0001>

<llo_original>
// kernel: tpu_custom_call.1
$region0: #{tpu_custom_call.1}
  #allocation0 [shape = 'u32[]', space=smem, size = 0x4, offset = 0x4, fixed_abs, tag = 'smem constant byte address 0x4 - core index']
  #allocation1 [shape = 'u32[144,128]{1,0:T(1,128)}', space=vmem, size = 0x12000, scoped, tag = 'internal scratch']
  %s0 = inlined_call_operand.vmem [shape: f32[4,512], index: 0, kind: input, shape index: {}]
  %s1 = inlined_call_operand.vmem [shape: f32[64,4], index: 1, kind: input, shape index: {}]
  %s2 = inlined_call_operand.vmem [shape: f32[64,1], index: 2, kind: input, shape index: {}]
  %s3 = inlined_call_operand.vmem [shape: f32[128,64], index: 3, kind: input, shape index: {}]
  %s4 = inlined_call_operand.vmem [shape: f32[128,128], index: 4, kind: input, shape index: {}]
  %s5 = inlined_call_operand.vmem [shape: f32[1,128], index: 5, kind: input, shape index: {}]
  %s6 = inlined_call_operand.hbm [shape: f32[1,512], index: 6, kind: output, shape index: {}]
  %s7 = sld [smem:[#allocation0]]
  $region57: #{tpu_custom_call.1} parent=0
    _
  %s9 = ssub.s32 1, %s7
  %s10 = scalar_select 0, %s9, %s7
  $region1: #{tpu_custom_call.1} parent=0
    #allocation2 [shape = 'u8[2048]{0}', space=vmem, size = 0x800, scoped, tag = 'output window, operand 0']
    #allocation3 [shape = 's32[2]{0}', space=sflag, size = 0x8, scoped, tag = 'scoped memory for tpu_custom_call.1']
    %11 = vsyncpa [#allocation3], 0
    %s12 = scalar_lea.sflag [#allocation3], 1
    %13 = vsyncpa %s12, 0
    loop: start=0, step=1, limit=4
    $region2: #{tpu_custom_call.1} parent=1 // loop_pre_header
      _
    $region3: #{tpu_custom_call.1} parent=1 // loop_header
      %s15 = sphi 0, %s19
      %p16 = scmp.ge.s32.totalorder %s15, 4
      %s25 = sphi 0, %s27
      %s28 = sphi 0, %s25
      %s29 = sphi 0, %s28
      %s45 = sphi 0, %s29
      %s49 = sphi 0, %s49
      %s51 = sphi 0, %s49
      %s52 = sphi 0, %s51
      %s66 = sphi 0, %s52
      %s70 = sphi 0, %s70
      %s72 = sphi 0, %s70
      %s73 = sphi 0, %s72
      %s87 = sphi 0, %s73
      %s91 = sphi 0, %s91
      %s93 = sphi 0, %s91
      %s94 = sphi 0, %s93
      %s108 = sphi 0, %s94
      %s112 = sphi 0, %s112
      %s114 = sphi 0, %s112
      %s115 = sphi 0, %s114
      %s129 = sphi 0, %s115
      %s133 = sphi 0, %s133
      %s135 = sphi 0, %s133
      %s136 = sphi 0, %s135
      %s150 = sphi 0, %s136
      %s156 = sphi 0, %s158
      %s159 = sphi 0, %s156
      %s160 = sphi 0, %s159
      %s176 = sphi 0, %s160
    $region4: #{tpu_custom_call.1} parent=1 // loop_header_branch
      %18 = sbr.rel (%p16) target = $region8
    $region5: #{tpu_custom_call.1} parent=1 // loop_body
      %s20 = ssub.s32 %s15, 1
      %s21 = ssub.s32 %s15, 2
      %s22 = sadd.s32 %s15, 1
      %s23 = ssub.s32 %s15, %s22
      %p24 = scmp.eq.s32.totalorder %s23, 0
      %s26 = sadd.s32 %s25, 1
      %s27 = scalar_select %p24, %s25, %s26
      %p30 = pneg %p24
      %p31 = scmp.eq.s32.totalorder %s15, 1
      %p32 = por %p30, %p31
      %p33 = scmp.ne.s32.totalorder %s25, %s28
      %p34 = scmp.eq.s32.totalorder %s15, 0
      %p35 = por %p33, %p34
      %p36 = scmp.ne.s32.totalorder %s25, %s28
      %p37 = scmp.eq.s32.totalorder %s20, 1
      %p38 = por %p36, %p37
      %p39 = scmp.ne.s32.totalorder %s28, %s29
      %p40 = scmp.eq.s32.totalorder %s20, 0
      %p41 = por %p39, %p40
      %p42 = scmp.ne.s32.totalorder %s28, %s29
      %p43 = scmp.eq.s32.totalorder %s21, 1
      %p44 = por %p42, %p43
      %p46 = scmp.ne.s32.totalorder %s29, %s45
      %p47 = scmp.eq.s32.totalorder %s21, 0
      %p48 = por %p46, %p47
      %s50 = sadd.s32 %s49, 1
      %p53 = scmp.eq.s32.totalorder %s15, 1
      %p54 = scmp.ne.s32.totalorder %s49, %s51
      %p55 = scmp.eq.s32.totalorder %s15, 0
      %p56 = por %p54, %p55
      %p57 = scmp.ne.s32.totalorder %s49, %s51
      %p58 = scmp.eq.s32.totalorder %s20, 1
      %p59 = por %p57, %p58
      %p60 = scmp.ne.s32.totalorder %s51, %s52
      %p61 = scmp.eq.s32.totalorder %s20, 0
      %p62 = por %p60, %p61
      %p63 = scmp.ne.s32.totalorder %s51, %s52
      %p64 = scmp.eq.s32.totalorder %s21, 1
      %p65 = por %p63, %p64
      %p67 = scmp.ne.s32.totalorder %s52, %s66
      %p68 = scmp.eq.s32.totalorder %s21, 0
      %p69 = por %p67, %p68
      %s71 = sadd.s32 %s70, 1
      %p74 = scmp.eq.s32.totalorder %s15, 1
      %p75 = scmp.ne.s32.totalorder %s70, %s72
      %p76 = scmp.eq.s32.totalorder %s15, 0
      %p77 = por %p75, %p76
      %p78 = scmp.ne.s32.totalorder %s70, %s72
      %p79 = scmp.eq.s32.totalorder %s20, 1
      %p80 = por %p78, %p79
      %p81 = scmp.ne.s32.totalorder %s72, %s73
      %p82 = scmp.eq.s32.totalorder %s20, 0
      %p83 = por %p81, %p82
      %p84 = scmp.ne.s32.totalorder %s72, %s73
      %p85 = scmp.eq.s32.totalorder %s21, 1
      %p86 = por %p84, %p85
      %p88 = scmp.ne.s32.totalorder %s73, %s87
      %p89 = scmp.eq.s32.totalorder %s21, 0
      %p90 = por %p88, %p89
      %s92 = sadd.s32 %s91, 1
      %p95 = scmp.eq.s32.totalorder %s15, 1
      %p96 = scmp.ne.s32.totalorder %s91, %s93
      %p97 = scmp.eq.s32.totalorder %s15, 0
      %p98 = por %p96, %p97
      %p99 = scmp.ne.s32.totalorder %s91, %s93
      %p100 = scmp.eq.s32.totalorder %s20, 1
      %p101 = por %p99, %p100
      %p102 = scmp.ne.s32.totalorder %s93, %s94
      %p103 = scmp.eq.s32.totalorder %s20, 0
      %p104 = por %p102, %p103
      %p105 = scmp.ne.s32.totalorder %s93, %s94
      %p106 = scmp.eq.s32.totalorder %s21, 1
      %p107 = por %p105, %p106
      %p109 = scmp.ne.s32.totalorder %s94, %s108
      %p110 = scmp.eq.s32.totalorder %s21, 0
      %p111 = por %p109, %p110
      %s113 = sadd.s32 %s112, 1
      %p116 = scmp.eq.s32.totalorder %s15, 1
      %p117 = scmp.ne.s32.totalorder %s112, %s114
      %p118 = scmp.eq.s32.totalorder %s15, 0
      %p119 = por %p117, %p118
      %p120 = scmp.ne.s32.totalorder %s112, %s114
      %p121 = scmp.eq.s32.totalorder %s20, 1
      %p122 = por %p120, %p121
      %p123 = scmp.ne.s32.totalorder %s114, %s115
      %p124 = scmp.eq.s32.totalorder %s20, 0
      %p125 = por %p123, %p124
      %p126 = scmp.ne.s32.totalorder %s114, %s115
      %p127 = scmp.eq.s32.totalorder %s21, 1
      %p128 = por %p126, %p127
      %p130 = scmp.ne.s32.totalorder %s115, %s129
      %p131 = scmp.eq.s32.totalorder %s21, 0
      %p132 = por %p130, %p131
      %s134 = sadd.s32 %s133, 1
      %p137 = scmp.eq.s32.totalorder %s15, 1
      %p138 = scmp.ne.s32.totalorder %s133, %s135
      %p139 = scmp.eq.s32.totalorder %s15, 0
      %p140 = por %p138, %p139
      %p141 = scmp.ne.s32.totalorder %s133, %s135
      %p142 = scmp.eq.s32.totalorder %s20, 1
      %p143 = por %p141, %p142
      %p144 = scmp.ne.s32.totalorder %s135, %s136
      %p145 = scmp.eq.s32.totalorder %s20, 0
      %p146 = por %p144, %p145
      %p147 = scmp.ne.s32.totalorder %s135, %s136
      %p148 = scmp.eq.s32.totalorder %s21, 1
      %p149 = por %p147, %p148
      %p151 = scmp.ne.s32.totalorder %s136, %s150
      %p152 = scmp.eq.s32.totalorder %s21, 0
      %p153 = por %p151, %p152
      %s154 = ssub.s32 %s15, %s22
      %p155 = scmp.eq.s32.totalorder %s154, 0
      %s157 = sadd.s32 %s156, 1
      %s158 = scalar_select %p155, %s156, %s157
      %p161 = pneg %p155
      %p162 = scmp.eq.s32.totalorder %s15, 1
      %p163 = por %p161, %p162
      %p164 = scmp.ne.s32.totalorder %s156, %s159
      %p165 = scmp.eq.s32.totalorder %s15, 0
      %p166 = por %p164, %p165
      %p167 = scmp.ne.s32.totalorder %s156, %s159
      %p168 = scmp.eq.s32.totalorder %s20, 1
      %p169 = por %p167, %p168
      %p170 = scmp.ne.s32.totalorder %s159, %s160
      %p171 = scmp.eq.s32.totalorder %s20, 0
      %p172 = por %p170, %p171
      %p173 = scmp.ne.s32.totalorder %s159, %s160
      %p174 = scmp.eq.s32.totalorder %s21, 1
      %p175 = por %p173, %p174
      %p177 = scmp.ne.s32.totalorder %s160, %s176
      %p178 = scmp.eq.s32.totalorder %s21, 0
      %p179 = por %p177, %p178
      %p180 = scmp.le.s32.totalorder 1, %s15
      %p181 = scmp.lt.s32.totalorder %s15, 3
      %p182 = pnand %p180, %p181
      %p183 = pneg %p182
      // Predicated region
      $region9: #{tpu_custom_call.1} parent=5 // pred_check
        _
      $region10: #{tpu_custom_call.1} parent=5 // pred_check_branch
        %185 = sbr.rel (%p182) target = $region12
      $region11: #{tpu_custom_call.1} parent=5 // pred_region
        %s186 = ssub.s32 %s15, 1
        // Predicated region
        $region13: #{tpu_custom_call.1} parent=11 // pred_check
          %p187 = pneg %p62
        $region14: #{tpu_custom_call.1} parent=11 // pred_check_branch
          %189 = sbr.rel (%p187) target = $region16
        $region15: #{tpu_custom_call.1} parent=11 // pred_region
          _
        $region16: #{tpu_custom_call.1} parent=11 // pred_fallthru
          _
        // Predicated region
        $region17: #{tpu_custom_call.1} parent=11 // pred_check
          %p190 = pneg %p83
        $region18: #{tpu_custom_call.1} parent=11 // pred_check_branch
          %192 = sbr.rel (%p190) target = $region20
        $region19: #{tpu_custom_call.1} parent=11 // pred_region
          _
        $region20: #{tpu_custom_call.1} parent=11 // pred_fallthru
          _
        // Predicated region
        $region21: #{tpu_custom_call.1} parent=11 // pred_check
          %p193 = pneg %p104
        $region22: #{tpu_custom_call.1} parent=11 // pred_check_branch
          %195 = sbr.rel (%p193) target = $region24
        $region23: #{tpu_custom_call.1} parent=11 // pred_region
          _
        $region24: #{tpu_custom_call.1} parent=11 // pred_fallthru
          _
        // Predicated region
        $region25: #{tpu_custom_call.1} parent=11 // pred_check
          %p196 = pneg %p125
        $region26: #{tpu_custom_call.1} parent=11 // pred_check_branch
          %198 = sbr.rel (%p196) target = $region28
        $region27: #{tpu_custom_call.1} parent=11 // pred_region
          _
        $region28: #{tpu_custom_call.1} parent=11 // pred_fallthru
          _
        // Predicated region
        $region29: #{tpu_custom_call.1} parent=11 // pred_check
          %p199 = pneg %p146
        $region30: #{tpu_custom_call.1} parent=11 // pred_check_branch
          %201 = sbr.rel (%p199) target = $region32
        $region31: #{tpu_custom_call.1} parent=11 // pred_region
          _
        $region32: #{tpu_custom_call.1} parent=11 // pred_fallthru
          _
      $region12: #{tpu_custom_call.1} parent=5 // pred_fallthru
        _
      %p202 = scmp.lt.s32.totalorder %s15, 2
      // Predicated region
      $region33: #{tpu_custom_call.1} parent=5 // pred_check
        %p203 = pneg %p202
      $region34: #{tpu_custom_call.1} parent=5 // pred_check_branch
        %205 = sbr.rel (%p203) target = $region36
      $region35: #{tpu_custom_call.1} parent=5 // pred_region
        // Predicated region
        $region37: #{tpu_custom_call.1} parent=35 // pred_check
          %p206 = pneg %p35
        $region38: #{tpu_custom_call.1} parent=35 // pred_check_branch
          %208 = sbr.rel (%p206) target = $region40
        $region39: #{tpu_custom_call.1} parent=35 // pred_region
          %s209 = smul.u32 2, %s15
          %p210 = scmp.lt.s32.totalorder %s209, 3
          %s211 = scalar_select %p210, %s209, 3
          %s212 = smul.addr %s211, 4
          %s213 = scalar_lea.vmem %s0, %s212
          %s214 = smul.u32 2, %s15
        $region40: #{tpu_custom_call.1} parent=35 // pred_fallthru
          _
      $region36: #{tpu_custom_call.1} parent=5 // pred_fallthru
        _
      %p215 = scmp.le.s32.totalorder 1, %s15
      %p216 = scmp.lt.s32.totalorder %s15, 3
      %p217 = pnand %p215, %p216
      %p218 = pneg %p217
      // Predicated region
      $region41: #{tpu_custom_call.1} parent=5 // pred_check
        _
      $region42: #{tpu_custom_call.1} parent=5 // pred_check_branch
        %220 = sbr.rel (%p217) target = $region44
      $region43: #{tpu_custom_call.1} parent=5 // pred_region
        %s221 = ssub.s32 %s15, 1
        %s222 = smul.u32 2, %s20
        %p223 = scmp.lt.s32.totalorder %s222, 3
        %s224 = scalar_select %p223, %s222, 3
        %s225 = smul.addr %s224, 4
        %s226 = scalar_lea.vmem %s0, %s225
        %p227 = pneg %p41
        %p228 = pneg %p38
        %p229 = pneg %p62
        %p230 = pneg %p59
        %p231 = pneg %p83
        %p232 = pneg %p80
        %p233 = pneg %p104
        %p234 = pneg %p101
        %p235 = pneg %p125
        %p236 = pneg %p122
        %p237 = pneg %p146
        %p238 = pneg %p143
        %p239 = pneg %p172
        %p240 = pneg %p169
        %s241 = sand.u32 %s159, 1
        %s242 = scalar_lea.sflag [#allocation3], %s241
        %s243 = sand.u32 %s159, 1
        %s244 = smul.addr %s243, 2
        %s245 = scalar_lea.vmem [#allocation2], %s244
        %s246 = smul.u32 2, %s20
        %p247 = scmp.lt.s32.totalorder %s246, 3
        %s248 = scalar_select %p247, %s246, 3
        %s249 = smul.addr %s248, 4
        %s250 = scalar_lea.vmem %s0, %s249
        %s251 = smul.u32 2, %s20
        %s252 = smul.u32 2, %s20
        %v253 = vld [vmem:[%s250] sm:$0xff]
        %v254 = vld [vmem:[%s1] sm:$0xff]
        %v255 = vld [vmem:[%s1 + $0x8] sm:$0xff]
        %v256 = vld [vmem:[%s1 + $0x10] sm:$0xff]
        %v257 = vld [vmem:[%s1 + $0x18] sm:$0xff]
        %v258 = vld [vmem:[%s1 + $0x20] sm:$0xff]
        %v259 = vld [vmem:[%s1 + $0x28] sm:$0xff]
        %v260 = vld [vmem:[%s1 + $0x30] sm:$0xff]
        %v261 = vld [vmem:[%s1 + $0x38] sm:$0xff]
        %v262 = vld [vmem:[%s2] sm:$0xff]
        %v263 = vld [vmem:[%s2 + $0x8] sm:$0xff]
        %v264 = vld [vmem:[%s2 + $0x10] sm:$0xff]
        %v265 = vld [vmem:[%s2 + $0x18] sm:$0xff]
        %v266 = vld [vmem:[%s2 + $0x20] sm:$0xff]
        %v267 = vld [vmem:[%s2 + $0x28] sm:$0xff]
        %v268 = vld [vmem:[%s2 + $0x30] sm:$0xff]
        %v269 = vld [vmem:[%s2 + $0x38] sm:$0xff]
        %271 = vset.pattern.permute.xlu0 0
        %272 = vperm.xlu0 %271, %v262
        %v273 = vpop.permute.xlu0 %272
        %276 = vset.pattern.permute.xlu0 0
        %277 = vperm.xlu0 %276, %v263
        %v278 = vpop.permute.xlu0 %277
        %281 = vset.pattern.permute.xlu0 0
        %282 = vperm.xlu0 %281, %v264
        %v283 = vpop.permute.xlu0 %282
        %286 = vset.pattern.permute.xlu0 0
        %287 = vperm.xlu0 %286, %v265
        %v288 = vpop.permute.xlu0 %287
        %291 = vset.pattern.permute.xlu0 0
        %292 = vperm.xlu0 %291, %v266
        %v293 = vpop.permute.xlu0 %292
        %296 = vset.pattern.permute.xlu0 0
        %297 = vperm.xlu0 %296, %v267
        %v298 = vpop.permute.xlu0 %297
        %301 = vset.pattern.permute.xlu0 0
        %302 = vperm.xlu0 %301, %v268
        %v303 = vpop.permute.xlu0 %302
        %306 = vset.pattern.permute.xlu0 0
        %307 = vperm.xlu0 %306, %v269
        %v308 = vpop.permute.xlu0 %307
        %v311 = vcombine.high %v253, %v253
        %vm312 = vcmask 31744
        %v314 = vsel %vm312, %v254, 0
        %v317 = vsel %vm312, %v255, 0
        %v320 = vsel %vm312, %v256, 0
        %v323 = vsel %vm312, %v257, 0
        %v326 = vsel %vm312, %v258, 0
        %v329 = vsel %vm312, %v259, 0
        %v332 = vsel %vm312, %v260, 0
        %v335 = vsel %vm312, %v261, 0
        %vm337 = vcmask 1043456
        %v338 = vsel %vm337, %v253, 0
        %v340 = vsel %vm337, %v311, 0
        %342 = vmatprep.subr.mxu0 %v340
        %343 = vmatpush1.msra.mxu0 %v338
        %344 = vmatprep.subr.mxu0 0.0
        %345 = vmatpush1.msra.mxu0 0.0
        %346 = vmatprep.subr.mxu0 0.0
        %347 = vmatpush1.msra.mxu0 0.0
        %348 = vmatprep.subr.mxu0 0.0
        %349 = vmatpush1.msra.mxu0 0.0
        %350 = vmatprep.subr.mxu0 0.0
        %351 = vmatpush1.msra.mxu0 0.0
        %352 = vmatprep.subr.mxu0 0.0
        %353 = vmatpush1.msra.mxu0 0.0
        %354 = vmatprep.subr.mxu0 0.0
        %355 = vmatpush1.msra.mxu0 0.0
        %356 = vmatprep.subr.mxu0 0.0
        %357 = vmatpush1.msra.mxu0 0.0
        %358 = vmatprep.subr.mxu0 0.0
        %359 = vmatpush1.msra.mxu0 0.0
        %360 = vmatprep.subr.mxu0 0.0
        %361 = vmatpush1.msra.mxu0 0.0
        %362 = vmatprep.subr.mxu0 0.0
        %363 = vmatpush1.msra.mxu0 0.0
        %364 = vmatprep.subr.mxu0 0.0
        %365 = vmatpush1.msra.mxu0 0.0
        %366 = vmatprep.subr.mxu0 0.0
        %367 = vmatpush1.msra.mxu0 0.0
        %368 = vmatprep.subr.mxu0 0.0
        %369 = vmatpush1.msra.mxu0 0.0
        %370 = vmatprep.subr.mxu0 0.0
        %371 = vmatpush1.msra.mxu0 0.0
        %372 = vmatprep.subr.mxu0 0.0
        %373 = vmatpush1.msra.mxu0 0.0
        %374 = vmatprep.subr.mxu0 0.0
        %375 = vmatpush1.msra.mxu0 0.0
        %376 = vmatprep.subr.mxu0 0.0
        %377 = vmatpush1.msra.mxu0 0.0
        %378 = vmatprep.subr.mxu0 0.0
        %379 = vmatpush1.msra.mxu0 0.0
        %380 = vmatprep.subr.mxu0 0.0
        %381 = vmatpush1.msra.mxu0 0.0
        %382 = vmatprep.subr.mxu0 0.0
        %383 = vmatpush1.msra.mxu0 0.0
        %384 = vmatprep.subr.mxu0 0.0
        %385 = vmatpush1.msra.mxu0 0.0
        %386 = vmatprep.subr.mxu0 0.0
        %387 = vmatpush1.msra.mxu0 0.0
        %388 = vmatprep.subr.mxu0 0.0
        %389 = vmatpush1.msra.mxu0 0.0
        %390 = vmatprep.subr.mxu0 0.0
        %391 = vmatpush1.msra.mxu0 0.0
        %392 = vmatprep.subr.mxu0 0.0
        %393 = vmatpush1.msra.mxu0 0.0
        %394 = vmatprep.subr.mxu0 0.0
        %395 = vmatpush1.msra.mxu0 0.0
        %396 = vmatprep.subr.mxu0 0.0
        %397 = vmatpush1.msra.mxu0 0.0
        %398 = vmatprep.subr.mxu0 0.0
        %399 = vmatpush1.msra.mxu0 0.0
        %400 = vmatprep.subr.mxu0 0.0
        %401 = vmatpush1.msra.mxu0 0.0
        %402 = vmatprep.subr.mxu0 0.0
        %403 = vmatpush1.msra.mxu0 0.0
        %404 = vmatprep.subr.mxu0 0.0
        %405 = vmatpush1.msra.mxu0 0.0
        %406 = vmatprep.mubr.f32.mxu0 0.0
        %407 = vmatmul.mubr.f32.gmra.mrb[0].mxu0 %v314
        %v408 = vpop.f32.mrb[0].mxu0
        %v409 = vadd.f32 %v273, %v408
        %v410 = vpop.f32.mrb[0].mxu0
        %v411 = vadd.f32 %v273, %v410
        %412 = vmatprep.mubr.f32.mxu0 0.0
        %413 = vmatmul.mubr.f32.gmra.mrb[0].mxu0 %v317
        %v414 = vpop.f32.mrb[0].mxu0
        %v415 = vadd.f32 %v278, %v414
        %v416 = vpop.f32.mrb[0].mxu0
        %v417 = vadd.f32 %v278, %v416
        %418 = vmatprep.mubr.f32.mxu0 0.0
        %419 = vmatmul.mubr.f32.gmra.mrb[0].mxu0 %v320
        %v420 = vpop.f32.mrb[0].mxu0
        %v421 = vadd.f32 %v283, %v420
        %v422 = vpop.f32.mrb[0].mxu0
        %v423 = vadd.f32 %v283, %v422
        %424 = vmatprep.mubr.f32.mxu0 0.0
        %425 = vmatmul.mubr.f32.gmra.mrb[0].mxu0 %v323
        %v426 = vpop.f32.mrb[0].mxu0
        %v427 = vadd.f32 %v288, %v426
        %v428 = vpop.f32.mrb[0].mxu0
        %v429 = vadd.f32 %v288, %v428
        %430 = vmatprep.mubr.f32.mxu0 0.0
        %431 = vmatmul.mubr.f32.gmra.mrb[0].mxu0 %v326
        %v432 = vpop.f32.mrb[0].mxu0
        %v433 = vadd.f32 %v293, %v432
        %v434 = vpop.f32.mrb[0].mxu0
        %v435 = vadd.f32 %v293, %v434
        %436 = vmatprep.mubr.f32.mxu0 0.0
        %437 = vmatmul.mubr.f32.gmra.mrb[0].mxu0 %v329
        %v438 = vpop.f32.mrb[0].mxu0
        %v439 = vadd.f32 %v298, %v438
        %v440 = vpop.f32.mrb[0].mxu0
        %v441 = vadd.f32 %v298, %v440
        %442 = vmatprep.mubr.f32.mxu0 0.0
        %443 = vmatmul.mubr.f32.gmra.mrb[0].mxu0 %v332
        %v444 = vpop.f32.mrb[0].mxu0
        %v445 = vadd.f32 %v303, %v444
        %v446 = vpop.f32.mrb[0].mxu0
        %v447 = vadd.f32 %v303, %v446
        %448 = vmatprep.mubr.f32.mxu0 0.0
        %449 = vmatmul.mubr.f32.gmra.mrb[0].mxu0 %v335
        %v450 = vpop.f32.mrb[0].mxu0
        %v451 = vadd.f32 %v308, %v450
        %v452 = vpop.f32.mrb[0].mxu0
        %v453 = vadd.f32 %v308, %v452
        %454 = vdwg.mxu0
        %vm455 = vcmp.ge.f32.partialorder %v409, 0.0
        %vm456 = vcmp.ge.f32.partialorder %v411, 0.0
        %vm457 = vcmp.ge.f32.partialorder %v415, 0.0
        %vm458 = vcmp.ge.f32.partialorder %v417, 0.0
        %vm459 = vcmp.ge.f32.partialorder %v421, 0.0
        %vm460 = vcmp.ge.f32.partialorder %v423, 0.0
        %vm461 = vcmp.ge.f32.partialorder %v427, 0.0
        %vm462 = vcmp.ge.f32.partialorder %v429, 0.0
        %vm463 = vcmp.ge.f32.partialorder %v433, 0.0
        %vm464 = vcmp.ge.f32.partialorder %v435, 0.0
        %vm465 = vcmp.ge.f32.partialorder %v439, 0.0
        %vm466 = vcmp.ge.f32.partialorder %v441, 0.0
        %vm467 = vcmp.ge.f32.partialorder %v445, 0.0
        %vm468 = vcmp.ge.f32.partialorder %v447, 0.0
        %vm469 = vcmp.ge.f32.partialorder %v451, 0.0
        %vm470 = vcmp.ge.f32.partialorder %v453, 0.0
        %v471 = vmul.f32 %v409, 0.2
        %v472 = vmul.f32 %v411, 0.2
        %v473 = vmul.f32 %v415, 0.2
        %v474 = vmul.f32 %v417, 0.2
        %v475 = vmul.f32 %v421, 0.2
        %v476 = vmul.f32 %v423, 0.2
        %v477 = vmul.f32 %v427, 0.2
        %v478 = vmul.f32 %v429, 0.2
        %v479 = vmul.f32 %v433, 0.2
        %v480 = vmul.f32 %v435, 0.2
        %v481 = vmul.f32 %v439, 0.2
        %v482 = vmul.f32 %v441, 0.2
        %v483 = vmul.f32 %v445, 0.2
        %v484 = vmul.f32 %v447, 0.2
        %v485 = vmul.f32 %v451, 0.2
        %v486 = vmul.f32 %v453, 0.2
        %v487 = vsel %vm455, %v409, %v471
        %v488 = vsel %vm456, %v411, %v472
        %v489 = vsel %vm457, %v415, %v473
        %v490 = vsel %vm458, %v417, %v474
        %v491 = vsel %vm459, %v421, %v475
        %v492 = vsel %vm460, %v423, %v476
        %v493 = vsel %vm461, %v427, %v477
        %v494 = vsel %vm462, %v429, %v478
        %v495 = vsel %vm463, %v433, %v479
        %v496 = vsel %vm464, %v435, %v480
        %v497 = vsel %vm465, %v439, %v481
        %v498 = vsel %vm466, %v441, %v482
        %v499 = vsel %vm467, %v445, %v483
        %v500 = vsel %vm468, %v447, %v484
        %v501 = vsel %vm469, %v451, %v485
        %v502 = vsel %vm470, %v453, %v486
        %v503 = vld [vmem:[%s3] sm:$0xff]
        %v504 = vld [vmem:[%s3 + $0x8] sm:$0xff]
        %v505 = vld [vmem:[%s3 + $0x10] sm:$0xff]
        %v506 = vld [vmem:[%s3 + $0x18] sm:$0xff]
        %v507 = vld [vmem:[%s3 + $0x20] sm:$0xff]
        %v508 = vld [vmem:[%s3 + $0x28] sm:$0xff]
        %v509 = vld [vmem:[%s3 + $0x30] sm:$0xff]
        %v510 = vld [vmem:[%s3 + $0x38] sm:$0xff]
        %v511 = vld [vmem:[%s3 + $0x40] sm:$0xff]
        %v512 = vld [vmem:[%s3 + $0x48] sm:$0xff]
        %v513 = vld [vmem:[%s3 + $0x50] sm:$0xff]
        %v514 = vld [vmem:[%s3 + $0x58] sm:$0xff]
        %v515 = vld [vmem:[%s3 + $0x60] sm:$0xff]
        %v516 = vld [vmem:[%s3 + $0x68] sm:$0xff]
        %v517 = vld [vmem:[%s3 + $0x70] sm:$0xff]
        %v518 = vld [vmem:[%s3 + $0x78] sm:$0xff]
        %vm519 = vcmask 523264
        %v521 = vsel %vm519, %v503, 0
        %v524 = vsel %vm519, %v504, 0
        %v527 = vsel %vm519, %v505, 0
        %v530 = vsel %vm519, %v506, 0
        %v533 = vsel %vm519, %v507, 0
        %v536 = vsel %vm519, %v508, 0
        %v539 = vsel %vm519, %v509, 0
        %v542 = vsel %vm519, %v510, 0
        %v545 = vsel %vm519, %v511, 0
        %v548 = vsel %vm519, %v512, 0
        %v551 = vsel %vm519, %v513, 0
        %v554 = vsel %vm519, %v514, 0
        %v557 = vsel %vm519, %v515, 0
        %v560 = vsel %vm519, %v516, 0
        %v563 = vsel %vm519, %v517, 0
        %v566 = vsel %vm519, %v518, 0
        %568 = vmatprep.subr.mxu0 %v488
        %569 = vmatpush1.msra.mxu0 %v487
        %570 = vmatprep.subr.mxu0 %v490
        %571 = vmatpush1.msra.mxu0 %v489
        %572 = vmatprep.subr.mxu0 %v492
        %573 = vmatpush1.msra.mxu0 %v491
        %574 = vmatprep.subr.mxu0 %v494
        %575 = vmatpush1.msra.mxu0 %v493
        %576 = vmatprep.subr.mxu0 %v496
        %577 = vmatpush1.msra.mxu0 %v495
        %578 = vmatprep.subr.mxu0 %v498
        %579 = vmatpush1.msra.mxu0 %v497
        %580 = vmatprep.subr.mxu0 %v500
        %581 = vmatpush1.msra.mxu0 %v499
        %582 = vmatprep.subr.mxu0 %v502
        %583 = vmatpush1.msra.mxu0 %v501
        %584 = vmatprep.subr.mxu0 0.0
        %585 = vmatpush1.msra.mxu0 0.0
        %586 = vmatprep.subr.mxu0 0.0
        %587 = vmatpush1.msra.mxu0 0.0
        %588 = vmatprep.subr.mxu0 0.0
        %589 = vmatpush1.msra.mxu0 0.0
        %590 = vmatprep.subr.mxu0 0.0
        %591 = vmatpush1.msra.mxu0 0.0
        %592 = vmatprep.subr.mxu0 0.0
        %593 = vmatpush1.msra.mxu0 0.0
        %594 = vmatprep.subr.mxu0 0.0
        %595 = vmatpush1.msra.mxu0 0.0
        %596 = vmatprep.subr.mxu0 0.0
        %597 = vmatpush1.msra.mxu0 0.0
        %598 = vmatprep.subr.mxu0 0.0
        %599 = vmatpush1.msra.mxu0 0.0
        %600 = vmatprep.subr.mxu0 0.0
        %601 = vmatpush1.msra.mxu0 0.0
        %602 = vmatprep.subr.mxu0 0.0
        %603 = vmatpush1.msra.mxu0 0.0
        %604 = vmatprep.subr.mxu0 0.0
        %605 = vmatpush1.msra.mxu0 0.0
        %606 = vmatprep.subr.mxu0 0.0
        %607 = vmatpush1.msra.mxu0 0.0
        %608 = vmatprep.subr.mxu0 0.0
        %609 = vmatpush1.msra.mxu0 0.0
        %610 = vmatprep.subr.mxu0 0.0
        %611 = vmatpush1.msra.mxu0 0.0
        %612 = vmatprep.subr.mxu0 0.0
        %613 = vmatpush1.msra.mxu0 0.0
        %614 = vmatprep.subr.mxu0 0.0
        %615 = vmatpush1.msra.mxu0 0.0
        %616 = vmatprep.subr.mxu0 0.0
        %617 = vmatpush1.msra.mxu0 0.0
        %618 = vmatprep.subr.mxu0 0.0
        %619 = vmatpush1.msra.mxu0 0.0
        %620 = vmatprep.subr.mxu0 0.0
        %621 = vmatpush1.msra.mxu0 0.0
        %622 = vmatprep.subr.mxu0 0.0
        %623 = vmatpush1.msra.mxu0 0.0
        %624 = vmatprep.subr.mxu0 0.0
        %625 = vmatpush1.msra.mxu0 0.0
        %626 = vmatprep.subr.mxu0 0.0
        %627 = vmatpush1.msra.mxu0 0.0
        %628 = vmatprep.subr.mxu0 0.0
        %629 = vmatpush1.msra.mxu0 0.0
        %630 = vmatprep.subr.mxu0 0.0
        %631 = vmatpush1.msra.mxu0 0.0
        %632 = vmatprep.mubr.f32.mxu0 0.0
        %633 = vmatmul.mubr.f32.gmra.mrb[0].mxu0 %v521
        %v634 = vpop.f32.mrb[0].mxu0
        %v635 = vadd.f32 0.0, %v634
        %v636 = vpop.f32.mrb[0].mxu0
        %v637 = vadd.f32 0.0, %v636
        %638 = vmatprep.mubr.f32.mxu0 0.0
        %639 = vmatmul.mubr.f32.gmra.mrb[0].mxu0 %v524
        %v640 = vpop.f32.mrb[0].mxu0
        %v641 = vadd.f32 0.0, %v640
        %v642 = vpop.f32.mrb[0].mxu0
        %v643 = vadd.f32 0.0, %v642
        %644 = vmatprep.mubr.f32.mxu0 0.0
        %645 = vmatmul.mubr.f32.gmra.mrb[0].mxu0 %v527
        %v646 = vpop.f32.mrb[0].mxu0
        %v647 = vadd.f32 0.0, %v646
        %v648 = vpop.f32.mrb[0].mxu0
        %v649 = vadd.f32 0.0, %v648
        %650 = vmatprep.mubr.f32.mxu0 0.0
        %651 = vmatmul.mubr.f32.gmra.mrb[0].mxu0 %v530
        %v652 = vpop.f32.mrb[0].mxu0
        %v653 = vadd.f32 0.0, %v652
        %v654 = vpop.f32.mrb[0].mxu0
        %v655 = vadd.f32 0.0, %v654
        %656 = vmatprep.mubr.f32.mxu0 0.0
        %657 = vmatmul.mubr.f32.gmra.mrb[0].mxu0 %v533
        %v658 = vpop.f32.mrb[0].mxu0
        %v659 = vadd.f32 0.0, %v658
        %v660 = vpop.f32.mrb[0].mxu0
        %v661 = vadd.f32 0.0, %v660
        %662 = vmatprep.mubr.f32.mxu0 0.0
        %663 = vmatmul.mubr.f32.gmra.mrb[0].mxu0 %v536
        %v664 = vpop.f32.mrb[0].mxu0
        %v665 = vadd.f32 0.0, %v664
        %v666 = vpop.f32.mrb[0].mxu0
        %v667 = vadd.f32 0.0, %v666
        %668 = vmatprep.mubr.f32.mxu0 0.0
        %669 = vmatmul.mubr.f32.gmra.mrb[0].mxu0 %v539
        %v670 = vpop.f32.mrb[0].mxu0
        %v671 = vadd.f32 0.0, %v670
        %v672 = vpop.f32.mrb[0].mxu0
        %v673 = vadd.f32 0.0, %v672
        %674 = vmatprep.mubr.f32.mxu0 0.0
        %675 = vmatmul.mubr.f32.gmra.mrb[0].mxu0 %v542
        %v676 = vpop.f32.mrb[0].mxu0
        %v677 = vadd.f32 0.0, %v676
        %v678 = vpop.f32.mrb[0].mxu0
        %v679 = vadd.f32 0.0, %v678
        %680 = vmatprep.mubr.f32.mxu0 0.0
        %681 = vmatmul.mubr.f32.gmra.mrb[0].mxu0 %v545
        %v682 = vpop.f32.mrb[0].mxu0
        %v683 = vadd.f32 0.0, %v682
        %v684 = vpop.f32.mrb[0].mxu0
        %v685 = vadd.f32 0.0, %v684
        %686 = vmatprep.mubr.f32.mxu0 0.0
        %687 = vmatmul.mubr.f32.gmra.mrb[0].mxu0 %v548
        %v688 = vpop.f32.mrb[0].mxu0
        %v689 = vadd.f32 0.0, %v688
        %v690 = vpop.f32.mrb[0].mxu0
        %v691 = vadd.f32 0.0, %v690
        %692 = vmatprep.mubr.f32.mxu0 0.0
        %693 = vmatmul.mubr.f32.gmra.mrb[0].mxu0 %v551
        %v694 = vpop.f32.mrb[0].mxu0
        %v695 = vadd.f32 0.0, %v694
        %v696 = vpop.f32.mrb[0].mxu0
        %v697 = vadd.f32 0.0, %v696
        %698 = vmatprep.mubr.f32.mxu0 0.0
        %699 = vmatmul.mubr.f32.gmra.mrb[0].mxu0 %v554
        %v700 = vpop.f32.mrb[0].mxu0
        %v701 = vadd.f32 0.0, %v700
        %v702 = vpop.f32.mrb[0].mxu0
        %v703 = vadd.f32 0.0, %v702
        %704 = vmatprep.mubr.f32.mxu0 0.0
        %705 = vmatmul.mubr.f32.gmra.mrb[0].mxu0 %v557
        %v706 = vpop.f32.mrb[0].mxu0
        %v707 = vadd.f32 0.0, %v706
        %v708 = vpop.f32.mrb[0].mxu0
        %v709 = vadd.f32 0.0, %v708
        %710 = vmatprep.mubr.f32.mxu0 0.0
        %711 = vmatmul.mubr.f32.gmra.mrb[0].mxu0 %v560
        %v712 = vpop.f32.mrb[0].mxu0
        %v713 = vadd.f32 0.0, %v712
        %v714 = vpop.f32.mrb[0].mxu0
        %v715 = vadd.f32 0.0, %v714
        %716 = vmatprep.mubr.f32.mxu0 0.0
        %717 = vmatmul.mubr.f32.gmra.mrb[0].mxu0 %v563
        %v718 = vpop.f32.mrb[0].mxu0
        %v719 = vadd.f32 0.0, %v718
        %v720 = vpop.f32.mrb[0].mxu0
        %v721 = vadd.f32 0.0, %v720
        %722 = vmatprep.mubr.f32.mxu0 0.0
        %723 = vmatmul.mubr.f32.gmra.mrb[0].mxu0 %v566
        %v724 = vpop.f32.mrb[0].mxu0
        %v725 = vadd.f32 0.0, %v724
        %v726 = vpop.f32.mrb[0].mxu0
        %v727 = vadd.f32 0.0, %v726
        %728 = vdwg.mxu0
        %vm729 = vcmp.ge.f32.partialorder %v635, 0.0
        %vm730 = vcmp.ge.f32.partialorder %v637, 0.0
        %vm731 = vcmp.ge.f32.partialorder %v641, 0.0
        %vm732 = vcmp.ge.f32.partialorder %v643, 0.0
        %vm733 = vcmp.ge.f32.partialorder %v647, 0.0
        %vm734 = vcmp.ge.f32.partialorder %v649, 0.0
        %vm735 = vcmp.ge.f32.partialorder %v653, 0.0
        %vm736 = vcmp.ge.f32.partialorder %v655, 0.0
        %vm737 = vcmp.ge.f32.partialorder %v659, 0.0
        %vm738 = vcmp.ge.f32.partialorder %v661, 0.0
        %vm739 = vcmp.ge.f32.partialorder %v665, 0.0
        %vm740 = vcmp.ge.f32.partialorder %v667, 0.0
        %vm741 = vcmp.ge.f32.partialorder %v671, 0.0
        %vm742 = vcmp.ge.f32.partialorder %v673, 0.0
        %vm743 = vcmp.ge.f32.partialorder %v677, 0.0
        %vm744 = vcmp.ge.f32.partialorder %v679, 0.0
        %vm745 = vcmp.ge.f32.partialorder %v683, 0.0
        %vm746 = vcmp.ge.f32.partialorder %v685, 0.0
        %vm747 = vcmp.ge.f32.partialorder %v689, 0.0
        %vm748 = vcmp.ge.f32.partialorder %v691, 0.0
        %vm749 = vcmp.ge.f32.partialorder %v695, 0.0
        %vm750 = vcmp.ge.f32.partialorder %v697, 0.0
        %vm751 = vcmp.ge.f32.partialorder %v701, 0.0
        %vm752 = vcmp.ge.f32.partialorder %v703, 0.0
        %vm753 = vcmp.ge.f32.partialorder %v707, 0.0
        %vm754 = vcmp.ge.f32.partialorder %v709, 0.0
        %vm755 = vcmp.ge.f32.partialorder %v713, 0.0
        %vm756 = vcmp.ge.f32.partialorder %v715, 0.0
        %vm757 = vcmp.ge.f32.partialorder %v719, 0.0
        %vm758 = vcmp.ge.f32.partialorder %v721, 0.0
        %vm759 = vcmp.ge.f32.partialorder %v725, 0.0
        %vm760 = vcmp.ge.f32.partialorder %v727, 0.0
        %v761 = vmul.f32 %v635, 0.2
        %v762 = vmul.f32 %v637, 0.2
        %v763 = vmul.f32 %v641, 0.2
        %v764 = vmul.f32 %v643, 0.2
        %v765 = vmul.f32 %v647, 0.2
        %v766 = vmul.f32 %v649, 0.2
        %v767 = vmul.f32 %v653, 0.2
        %v768 = vmul.f32 %v655, 0.2
        %v769 = vmul.f32 %v659, 0.2
        %v770 = vmul.f32 %v661, 0.2
        %v771 = vmul.f32 %v665, 0.2
        %v772 = vmul.f32 %v667, 0.2
        %v773 = vmul.f32 %v671, 0.2
        %v774 = vmul.f32 %v673, 0.2
        %v775 = vmul.f32 %v677, 0.2
        %v776 = vmul.f32 %v679, 0.2
        %v777 = vmul.f32 %v683, 0.2
        %v778 = vmul.f32 %v685, 0.2
        %v779 = vmul.f32 %v689, 0.2
        %v780 = vmul.f32 %v691, 0.2
        %v781 = vmul.f32 %v695, 0.2
        %v782 = vmul.f32 %v697, 0.2
        %v783 = vmul.f32 %v701, 0.2
        %v784 = vmul.f32 %v703, 0.2
        %v785 = vmul.f32 %v707, 0.2
        %v786 = vmul.f32 %v709, 0.2
        %v787 = vmul.f32 %v713, 0.2
        %v788 = vmul.f32 %v715, 0.2
        %v789 = vmul.f32 %v719, 0.2
        %v790 = vmul.f32 %v721, 0.2
        %v791 = vmul.f32 %v725, 0.2
        %v792 = vmul.f32 %v727, 0.2
        %v793 = vsel %vm729, %v635, %v761
        %v794 = vsel %vm730, %v637, %v762
        %v795 = vsel %vm731, %v641, %v763
        %v796 = vsel %vm732, %v643, %v764
        %v797 = vsel %vm733, %v647, %v765
        %v798 = vsel %vm734, %v649, %v766
        %v799 = vsel %vm735, %v653, %v767
        %v800 = vsel %vm736, %v655, %v768
        %v801 = vsel %vm737, %v659, %v769
        %v802 = vsel %vm738, %v661, %v770
        %v803 = vsel %vm739, %v665, %v771
        %v804 = vsel %vm740, %v667, %v772
        %v805 = vsel %vm741, %v671, %v773
        %v806 = vsel %vm742, %v673, %v774
        %v807 = vsel %vm743, %v677, %v775
        %v808 = vsel %vm744, %v679, %v776
        %v809 = vsel %vm745, %v683, %v777
        %v810 = vsel %vm746, %v685, %v778
        %v811 = vsel %vm747, %v689, %v779
        %v812 = vsel %vm748, %v691, %v780
        %v813 = vsel %vm749, %v695, %v781
        %v814 = vsel %vm750, %v697, %v782
        %v815 = vsel %vm751, %v701, %v783
        %v816 = vsel %vm752, %v703, %v784
        %v817 = vsel %vm753, %v707, %v785
        %v818 = vsel %vm754, %v709, %v786
        %v819 = vsel %vm755, %v713, %v787
        %v820 = vsel %vm756, %v715, %v788
        %v821 = vsel %vm757, %v719, %v789
        %v822 = vsel %vm758, %v721, %v790
        %v823 = vsel %vm759, %v725, %v791
        %v824 = vsel %vm760, %v727, %v792
        %v825 = vld [vmem:[%s4] sm:$0xff]
        %v826 = vld [vmem:[%s4 + $0x8] sm:$0xff]
        %v827 = vld [vmem:[%s4 + $0x10] sm:$0xff]
        %v828 = vld [vmem:[%s4 + $0x18] sm:$0xff]
        %v829 = vld [vmem:[%s4 + $0x20] sm:$0xff]
        %v830 = vld [vmem:[%s4 + $0x28] sm:$0xff]
        %v831 = vld [vmem:[%s4 + $0x30] sm:$0xff]
        %v832 = vld [vmem:[%s4 + $0x38] sm:$0xff]
        %v833 = vld [vmem:[%s4 + $0x40] sm:$0xff]
        %v834 = vld [vmem:[%s4 + $0x48] sm:$0xff]
        %v835 = vld [vmem:[%s4 + $0x50] sm:$0xff]
        %v836 = vld [vmem:[%s4 + $0x58] sm:$0xff]
        %v837 = vld [vmem:[%s4 + $0x60] sm:$0xff]
        %v838 = vld [vmem:[%s4 + $0x68] sm:$0xff]
        %v839 = vld [vmem:[%s4 + $0x70] sm:$0xff]
        %v840 = vld [vmem:[%s4 + $0x78] sm:$0xff]
        %841 = vmatprep.subr.mxu0 %v794
        %842 = vmatpush1.msra.mxu0 %v793
        %843 = vmatprep.subr.mxu0 %v796
        %844 = vmatpush1.msra.mxu0 %v795
        %845 = vmatprep.subr.mxu0 %v798
        %846 = vmatpush1.msra.mxu0 %v797
        %847 = vmatprep.subr.mxu0 %v800
        %848 = vmatpush1.msra.mxu0 %v799
        %849 = vmatprep.subr.mxu0 %v802
        %850 = vmatpush1.msra.mxu0 %v801
        %851 = vmatprep.subr.mxu0 %v804
        %852 = vmatpush1.msra.mxu0 %v803
        %853 = vmatprep.subr.mxu0 %v806
        %854 = vmatpush1.msra.mxu0 %v805
        %855 = vmatprep.subr.mxu0 %v808
        %856 = vmatpush1.msra.mxu0 %v807
        %857 = vmatprep.subr.mxu0 %v810
        %858 = vmatpush1.msra.mxu0 %v809
        %859 = vmatprep.subr.mxu0 %v812
        %860 = vmatpush1.msra.mxu0 %v811
        %861 = vmatprep.subr.mxu0 %v814
        %862 = vmatpush1.msra.mxu0 %v813
        %863 = vmatprep.subr.mxu0 %v816
        %864 = vmatpush1.msra.mxu0 %v815
        %865 = vmatprep.subr.mxu0 %v818
        %866 = vmatpush1.msra.mxu0 %v817
        %867 = vmatprep.subr.mxu0 %v820
        %868 = vmatpush1.msra.mxu0 %v819
        %869 = vmatprep.subr.mxu0 %v822
        %870 = vmatpush1.msra.mxu0 %v821
        %871 = vmatprep.subr.mxu0 %v824
        %872 = vmatpush1.msra.mxu0 %v823
        %873 = vmatprep.subr.mxu0 0.0
        %874 = vmatpush1.msra.mxu0 0.0
        %875 = vmatprep.subr.mxu0 0.0
        %876 = vmatpush1.msra.mxu0 0.0
        %877 = vmatprep.subr.mxu0 0.0
        %878 = vmatpush1.msra.mxu0 0.0
        %879 = vmatprep.subr.mxu0 0.0
        %880 = vmatpush1.msra.mxu0 0.0
        %881 = vmatprep.subr.mxu0 0.0
        %882 = vmatpush1.msra.mxu0 0.0
        %883 = vmatprep.subr.mxu0 0.0
        %884 = vmatpush1.msra.mxu0 0.0
        %885 = vmatprep.subr.mxu0 0.0
        %886 = vmatpush1.msra.mxu0 0.0
        %887 = vmatprep.subr.mxu0 0.0
        %888 = vmatpush1.msra.mxu0 0.0
        %889 = vmatprep.subr.mxu0 0.0
        %890 = vmatpush1.msra.mxu0 0.0
        %891 = vmatprep.subr.mxu0 0.0
        %892 = vmatpush1.msra.mxu0 0.0
        %893 = vmatprep.subr.mxu0 0.0
        %894 = vmatpush1.msra.mxu0 0.0
        %895 = vmatprep.subr.mxu0 0.0
        %896 = vmatpush1.msra.mxu0 0.0
        %897 = vmatprep.subr.mxu0 0.0
        %898 = vmatpush1.msra.mxu0 0.0
        %899 = vmatprep.subr.mxu0 0.0
        %900 = vmatpush1.msra.mxu0 0.0
        %901 = vmatprep.subr.mxu0 0.0
        %902 = vmatpush1.msra.mxu0 0.0
        %903 = vmatprep.subr.mxu0 0.0
        %904 = vmatpush1.msra.mxu0 0.0
        %905 = vmatprep.mubr.f32.mxu0 0.0
        %906 = vmatmul.mubr.f32.gmra.mrb[0].mxu0 %v825
        %v907 = vpop.f32.mrb[0].mxu0
        %v908 = vadd.f32 0.0, %v907
        %v909 = vpop.f32.mrb[0].mxu0
        %v910 = vadd.f32 0.0, %v909
        %911 = vmatprep.mubr.f32.mxu0 0.0
        %912 = vmatmul.mubr.f32.gmra.mrb[0].mxu0 %v826
        %v913 = vpop.f32.mrb[0].mxu0
        %v914 = vadd.f32 0.0, %v913
        %v915 = vpop.f32.mrb[0].mxu0
        %v916 = vadd.f32 0.0, %v915
        %917 = vmatprep.mubr.f32.mxu0 0.0
        %918 = vmatmul.mubr.f32.gmra.mrb[0].mxu0 %v827
        %v919 = vpop.f32.mrb[0].mxu0
        %v920 = vadd.f32 0.0, %v919
        %v921 = vpop.f32.mrb[0].mxu0
        %v922 = vadd.f32 0.0, %v921
        %923 = vmatprep.mubr.f32.mxu0 0.0
        %924 = vmatmul.mubr.f32.gmra.mrb[0].mxu0 %v828
        %v925 = vpop.f32.mrb[0].mxu0
        %v926 = vadd.f32 0.0, %v925
        %v927 = vpop.f32.mrb[0].mxu0
        %v928 = vadd.f32 0.0, %v927
        %929 = vmatprep.mubr.f32.mxu0 0.0
        %930 = vmatmul.mubr.f32.gmra.mrb[0].mxu0 %v829
        %v931 = vpop.f32.mrb[0].mxu0
        %v932 = vadd.f32 0.0, %v931
        %v933 = vpop.f32.mrb[0].mxu0
        %v934 = vadd.f32 0.0, %v933
        %935 = vmatprep.mubr.f32.mxu0 0.0
        %936 = vmatmul.mubr.f32.gmra.mrb[0].mxu0 %v830
        %v937 = vpop.f32.mrb[0].mxu0
        %v938 = vadd.f32 0.0, %v937
        %v939 = vpop.f32.mrb[0].mxu0
        %v940 = vadd.f32 0.0, %v939
        %941 = vmatprep.mubr.f32.mxu0 0.0
        %942 = vmatmul.mubr.f32.gmra.mrb[0].mxu0 %v831
        %v943 = vpop.f32.mrb[0].mxu0
        %v944 = vadd.f32 0.0, %v943
        %v945 = vpop.f32.mrb[0].mxu0
        %v946 = vadd.f32 0.0, %v945
        %947 = vmatprep.mubr.f32.mxu0 0.0
        %948 = vmatmul.mubr.f32.gmra.mrb[0].mxu0 %v832
        %v949 = vpop.f32.mrb[0].mxu0
        %v950 = vadd.f32 0.0, %v949
        %v951 = vpop.f32.mrb[0].mxu0
        %v952 = vadd.f32 0.0, %v951
        %953 = vmatprep.mubr.f32.mxu0 0.0
        %954 = vmatmul.mubr.f32.gmra.mrb[0].mxu0 %v833
        %v955 = vpop.f32.mrb[0].mxu0
        %v956 = vadd.f32 0.0, %v955
        %v957 = vpop.f32.mrb[0].mxu0
        %v958 = vadd.f32 0.0, %v957
        %959 = vmatprep.mubr.f32.mxu0 0.0
        %960 = vmatmul.mubr.f32.gmra.mrb[0].mxu0 %v834
        %v961 = vpop.f32.mrb[0].mxu0
        %v962 = vadd.f32 0.0, %v961
        %v963 = vpop.f32.mrb[0].mxu0
        %v964 = vadd.f32 0.0, %v963
        %965 = vmatprep.mubr.f32.mxu0 0.0
        %966 = vmatmul.mubr.f32.gmra.mrb[0].mxu0 %v835
        %v967 = vpop.f32.mrb[0].mxu0
        %v968 = vadd.f32 0.0, %v967
        %v969 = vpop.f32.mrb[0].mxu0
        %v970 = vadd.f32 0.0, %v969
        %971 = vmatprep.mubr.f32.mxu0 0.0
        %972 = vmatmul.mubr.f32.gmra.mrb[0].mxu0 %v836
        %v973 = vpop.f32.mrb[0].mxu0
        %v974 = vadd.f32 0.0, %v973
        %v975 = vpop.f32.mrb[0].mxu0
        %v976 = vadd.f32 0.0, %v975
        %977 = vmatprep.mubr.f32.mxu0 0.0
        %978 = vmatmul.mubr.f32.gmra.mrb[0].mxu0 %v837
        %v979 = vpop.f32.mrb[0].mxu0
        %v980 = vadd.f32 0.0, %v979
        %v981 = vpop.f32.mrb[0].mxu0
        %v982 = vadd.f32 0.0, %v981
        %983 = vmatprep.mubr.f32.mxu0 0.0
        %984 = vmatmul.mubr.f32.gmra.mrb[0].mxu0 %v838
        %v985 = vpop.f32.mrb[0].mxu0
        %v986 = vadd.f32 0.0, %v985
        %v987 = vpop.f32.mrb[0].mxu0
        %v988 = vadd.f32 0.0, %v987
        %989 = vmatprep.mubr.f32.mxu0 0.0
        %990 = vmatmul.mubr.f32.gmra.mrb[0].mxu0 %v839
        %v991 = vpop.f32.mrb[0].mxu0
        %v992 = vadd.f32 0.0, %v991
        %v993 = vpop.f32.mrb[0].mxu0
        %v994 = vadd.f32 0.0, %v993
        %995 = vmatprep.mubr.f32.mxu0 0.0
        %996 = vmatmul.mubr.f32.gmra.mrb[0].mxu0 %v840
        %v997 = vpop.f32.mrb[0].mxu0
        %v998 = vadd.f32 0.0, %v997
        %v999 = vpop.f32.mrb[0].mxu0
        %v1000 = vadd.f32 0.0, %v999
        %1001 = vdwg.mxu0
        %vm1002 = vcmp.ge.f32.partialorder %v908, 0.0
        %vm1003 = vcmp.ge.f32.partialorder %v910, 0.0
        %vm1004 = vcmp.ge.f32.partialorder %v914, 0.0
        %vm1005 = vcmp.ge.f32.partialorder %v916, 0.0
        %vm1006 = vcmp.ge.f32.partialorder %v920, 0.0
        %vm1007 = vcmp.ge.f32.partialorder %v922, 0.0
        %vm1008 = vcmp.ge.f32.partialorder %v926, 0.0
        %vm1009 = vcmp.ge.f32.partialorder %v928, 0.0
        %vm1010 = vcmp.ge.f32.partialorder %v932, 0.0
        %vm1011 = vcmp.ge.f32.partialorder %v934, 0.0
        %vm1012 = vcmp.ge.f32.partialorder %v938, 0.0
        %vm1013 = vcmp.ge.f32.partialorder %v940, 0.0
        %vm1014 = vcmp.ge.f32.partialorder %v944, 0.0
        %vm1015 = vcmp.ge.f32.partialorder %v946, 0.0
        %vm1016 = vcmp.ge.f32.partialorder %v950, 0.0
        %vm1017 = vcmp.ge.f32.partialorder %v952, 0.0
        %vm1018 = vcmp.ge.f32.partialorder %v956, 0.0
        %vm1019 = vcmp.ge.f32.partialorder %v958, 0.0
        %vm1020 = vcmp.ge.f32.partialorder %v962, 0.0
        %vm1021 = vcmp.ge.f32.partialorder %v964, 0.0
        %vm1022 = vcmp.ge.f32.partialorder %v968, 0.0
        %vm1023 = vcmp.ge.f32.partialorder %v970, 0.0
        %vm1024 = vcmp.ge.f32.partialorder %v974, 0.0
        %vm1025 = vcmp.ge.f32.partialorder %v976, 0.0
        %vm1026 = vcmp.ge.f32.partialorder %v980, 0.0
        %vm1027 = vcmp.ge.f32.partialorder %v982, 0.0
        %vm1028 = vcmp.ge.f32.partialorder %v986, 0.0
        %vm1029 = vcmp.ge.f32.partialorder %v988, 0.0
        %vm1030 = vcmp.ge.f32.partialorder %v992, 0.0
        %vm1031 = vcmp.ge.f32.partialorder %v994, 0.0
        %vm1032 = vcmp.ge.f32.partialorder %v998, 0.0
        %vm1033 = vcmp.ge.f32.partialorder %v1000, 0.0
        %v1034 = vmul.f32 %v908, 0.2
        %v1035 = vmul.f32 %v910, 0.2
        %v1036 = vmul.f32 %v914, 0.2
        %v1037 = vmul.f32 %v916, 0.2
        %v1038 = vmul.f32 %v920, 0.2
        %v1039 = vmul.f32 %v922, 0.2
        %v1040 = vmul.f32 %v926, 0.2
        %v1041 = vmul.f32 %v928, 0.2
        %v1042 = vmul.f32 %v932, 0.2
        %v1043 = vmul.f32 %v934, 0.2
        %v1044 = vmul.f32 %v938, 0.2
        %v1045 = vmul.f32 %v940, 0.2
        %v1046 = vmul.f32 %v944, 0.2
        %v1047 = vmul.f32 %v946, 0.2
        %v1048 = vmul.f32 %v950, 0.2
        %v1049 = vmul.f32 %v952, 0.2
        %v1050 = vmul.f32 %v956, 0.2
        %v1051 = vmul.f32 %v958, 0.2
        %v1052 = vmul.f32 %v962, 0.2
        %v1053 = vmul.f32 %v964, 0.2
        %v1054 = vmul.f32 %v968, 0.2
        %v1055 = vmul.f32 %v970, 0.2
        %v1056 = vmul.f32 %v974, 0.2
        %v1057 = vmul.f32 %v976, 0.2
        %v1058 = vmul.f32 %v980, 0.2
        %v1059 = vmul.f32 %v982, 0.2
        %v1060 = vmul.f32 %v986, 0.2
        %v1061 = vmul.f32 %v988, 0.2
        %v1062 = vmul.f32 %v992, 0.2
        %v1063 = vmul.f32 %v994, 0.2
        %v1064 = vmul.f32 %v998, 0.2
        %v1065 = vmul.f32 %v1000, 0.2
        %v1066 = vsel %vm1002, %v908, %v1034
        %v1067 = vsel %vm1003, %v910, %v1035
        %v1068 = vsel %vm1004, %v914, %v1036
        %v1069 = vsel %vm1005, %v916, %v1037
        %v1070 = vsel %vm1006, %v920, %v1038
        %v1071 = vsel %vm1007, %v922, %v1039
        %v1072 = vsel %vm1008, %v926, %v1040
        %v1073 = vsel %vm1009, %v928, %v1041
        %v1074 = vsel %vm1010, %v932, %v1042
        %v1075 = vsel %vm1011, %v934, %v1043
        %v1076 = vsel %vm1012, %v938, %v1044
        %v1077 = vsel %vm1013, %v940, %v1045
        %v1078 = vsel %vm1014, %v944, %v1046
        %v1079 = vsel %vm1015, %v946, %v1047
        %v1080 = vsel %vm1016, %v950, %v1048
        %v1081 = vsel %vm1017, %v952, %v1049
        %v1082 = vsel %vm1018, %v956, %v1050
        %v1083 = vsel %vm1019, %v958, %v1051
        %v1084 = vsel %vm1020, %v962, %v1052
        %v1085 = vsel %vm1021, %v964, %v1053
        %v1086 = vsel %vm1022, %v968, %v1054
        %v1087 = vsel %vm1023, %v970, %v1055
        %v1088 = vsel %vm1024, %v974, %v1056
        %v1089 = vsel %vm1025, %v976, %v1057
        %v1090 = vsel %vm1026, %v980, %v1058
        %v1091 = vsel %vm1027, %v982, %v1059
        %v1092 = vsel %vm1028, %v986, %v1060
        %v1093 = vsel %vm1029, %v988, %v1061
        %v1094 = vsel %vm1030, %v992, %v1062
        %v1095 = vsel %vm1031, %v994, %v1063
        %v1096 = vsel %vm1032, %v998, %v1064
        %v1097 = vsel %vm1033, %v1000, %v1065
        %v1098 = vld [vmem:[%s5] sm:$0x1]
        %1099 = vmatprep.subr.mxu0 %v1067
        %1100 = vmatpush1.msra.mxu0 %v1066
        %1101 = vmatprep.subr.mxu0 %v1069
        %1102 = vmatpush1.msra.mxu0 %v1068
        %1103 = vmatprep.subr.mxu0 %v1071
        %1104 = vmatpush1.msra.mxu0 %v1070
        %1105 = vmatprep.subr.mxu0 %v1073
        %1106 = vmatpush1.msra.mxu0 %v1072
        %1107 = vmatprep.subr.mxu0 %v1075
        %1108 = vmatpush1.msra.mxu0 %v1074
        %1109 = vmatprep.subr.mxu0 %v1077
        %1110 = vmatpush1.msra.mxu0 %v1076
        %1111 = vmatprep.subr.mxu0 %v1079
        %1112 = vmatpush1.msra.mxu0 %v1078
        %1113 = vmatprep.subr.mxu0 %v1081
        %1114 = vmatpush1.msra.mxu0 %v1080
        %1115 = vmatprep.subr.mxu0 %v1083
        %1116 = vmatpush1.msra.mxu0 %v1082
        %1117 = vmatprep.subr.mxu0 %v1085
        %1118 = vmatpush1.msra.mxu0 %v1084
        %1119 = vmatprep.subr.mxu0 %v1087
        %1120 = vmatpush1.msra.mxu0 %v1086
        %1121 = vmatprep.subr.mxu0 %v1089
        %1122 = vmatpush1.msra.mxu0 %v1088
        %1123 = vmatprep.subr.mxu0 %v1091
        %1124 = vmatpush1.msra.mxu0 %v1090
        %1125 = vmatprep.subr.mxu0 %v1093
        %1126 = vmatpush1.msra.mxu0 %v1092
        %1127 = vmatprep.subr.mxu0 %v1095
        %1128 = vmatpush1.msra.mxu0 %v1094
        %1129 = vmatprep.subr.mxu0 %v1097
        %1130 = vmatpush1.msra.mxu0 %v1096
        %1131 = vmatprep.subr.mxu0 0.0
        %1132 = vmatpush1.msra.mxu0 0.0
        %1133 = vmatprep.subr.mxu0 0.0
        %1134 = vmatpush1.msra.mxu0 0.0
        %1135 = vmatprep.subr.mxu0 0.0
        %1136 = vmatpush1.msra.mxu0 0.0
        %1137 = vmatprep.subr.mxu0 0.0
        %1138 = vmatpush1.msra.mxu0 0.0
        %1139 = vmatprep.subr.mxu0 0.0
        %1140 = vmatpush1.msra.mxu0 0.0
        %1141 = vmatprep.subr.mxu0 0.0
        %1142 = vmatpush1.msra.mxu0 0.0
        %1143 = vmatprep.subr.mxu0 0.0
        %1144 = vmatpush1.msra.mxu0 0.0
        %1145 = vmatprep.subr.mxu0 0.0
        %1146 = vmatpush1.msra.mxu0 0.0
        %1147 = vmatprep.subr.mxu0 0.0
        %1148 = vmatpush1.msra.mxu0 0.0
        %1149 = vmatprep.subr.mxu0 0.0
        %1150 = vmatpush1.msra.mxu0 0.0
        %1151 = vmatprep.subr.mxu0 0.0
        %1152 = vmatpush1.msra.mxu0 0.0
        %1153 = vmatprep.subr.mxu0 0.0
        %1154 = vmatpush1.msra.mxu0 0.0
        %1155 = vmatprep.subr.mxu0 0.0
        %1156 = vmatpush1.msra.mxu0 0.0
        %1157 = vmatprep.subr.mxu0 0.0
        %1158 = vmatpush1.msra.mxu0 0.0
        %1159 = vmatprep.subr.mxu0 0.0
        %1160 = vmatpush1.msra.mxu0 0.0
        %1161 = vmatprep.subr.mxu0 0.0
        %1162 = vmatpush1.msra.mxu0 0.0
        %1163 = vmatprep.mubr.f32.mxu0 0.0
        %1164 = vmatmul.mubr.f32.gmra.mrb[0].mxu0 %v1098
        %v1165 = vpop.f32.mrb[0].mxu0
        %v1166 = vadd.f32 0.0, %v1165
        %v1167 = vpop.f32.mrb[0].mxu0
        %v1168 = vadd.f32 0.0, %v1167
        %1169 = vdwg.mxu0
        %v1172 = vcombine.low %v1166, %v1168
        %v1174 = vunpack.c.l.s4 1966171168
        %v1175 = vunpack.c.0.s8 %v1174
        %v1176 = vlaneseq
        %v1177 = vshrl.u32 %v1176, 7
        %v1178 = vsub.s32 %v1175, %v1177
        %v1179 = vrot.slane %v1172, %v1178
        %v1181 = vunpack.c.l.s4 1966171168
        %v1182 = vunpack.c.0.s8 %v1181
        %v1183 = vlaneseq
        %v1184 = vshrl.u32 %v1183, 7
        %v1185 = vsub.s32 %v1182, %v1184
        %v1186 = vrot.slane %v1179, %v1185
        %v1188 = vlaneseq
        %vm1189 = vcmp.ge.s32.totalorder %v1188, 0
        %vm1190 = vcmp.lt.s32.totalorder %v1188, 256
        %vm1191 = vmand %vm1189, %vm1190
        %1192 = vst.msk [vmem:[%s245] sm:$0x3] %vm1191, %v1186
        %s1193 = sand.u32 %s159, 1
        %s1194 = scalar_lea.sflag [#allocation3], %s1193
        %s1195 = sand.u32 %s159, 1
        %s1196 = smul.addr %s1195, 2
        %s1197 = scalar_lea.vmem [#allocation2], %s1196
        // Predicated region
        $region45: #{tpu_custom_call.1} parent=43 // pred_check
          %p1198 = pneg %p169
        $region46: #{tpu_custom_call.1} parent=43 // pred_check_branch
          %1200 = sbr.rel (%p1198) target = $region48
        $region47: #{tpu_custom_call.1} parent=43 // pred_region
          %s1201 = smul.u32 2, %s20
          %s1203 = ssub.s32 32, 32
          %1204 = vsyncadd %s1194, %s1203
          %s1205 = smul.addr %s1201, 16
          %s1206 = scalar_lea.hbm %s6, %s1205
          %s1208 = sshll.u32 %s1197, 4
          %s1209 = int_to_ptr.vmem [resolvable:$true] %s1208
          %1211 = dma.vmem_to_hbm [thread:$0]  %s1209, 32, %s1206, %s1194
        $region48: #{tpu_custom_call.1} parent=43 // pred_fallthru
          _
      $region44: #{tpu_custom_call.1} parent=5 // pred_fallthru
        _
      %p1212 = scmp.le.s32.totalorder 2, %s15
      // Predicated region
      $region49: #{tpu_custom_call.1} parent=5 // pred_check
        %p1213 = pneg %p1212
      $region50: #{tpu_custom_call.1} parent=5 // pred_check_branch
        %1215 = sbr.rel (%p1213) target = $region52
      $region51: #{tpu_custom_call.1} parent=5 // pred_region
        %s1216 = ssub.s32 %s15, 2
        // Predicated region
        $region53: #{tpu_custom_call.1} parent=51 // pred_check
          %p1217 = pneg %p175
        $region54: #{tpu_custom_call.1} parent=51 // pred_check_branch
          %1219 = sbr.rel (%p1217) target = $region56
        $region55: #{tpu_custom_call.1} parent=51 // pred_region
          %s1220 = sand.u32 %s160, 1
          %s1221 = scalar_lea.sflag [#allocation3], %s1220
          %s1222 = sand.u32 %s160, 1
          %s1223 = smul.addr %s1222, 2
          %s1224 = scalar_lea.vmem [#allocation2], %s1223
          %1225 = dma.done %s1221, 32
        $region56: #{tpu_custom_call.1} parent=51 // pred_fallthru
          _
      $region52: #{tpu_custom_call.1} parent=5 // pred_fallthru
        _
    $region6: #{tpu_custom_call.1} parent=1 // loop_footer
      %s19 = sadd.s32 1, %s15
    $region7: #{tpu_custom_call.1} parent=1 // loop_footer_branch
      %14 = sbr.rel target = $region3
    $region8: #{tpu_custom_call.1} parent=1 // loop_exit
      _
    %1226 = vsyncpa [#allocation3], 1
    %s1227 = scalar_lea.sflag [#allocation3], 1
    %1228 = vsyncpa %s1227, 1

</llo_original>
